<compile_context>
chip_gen: v7x
topology: tpu7x:2x2x1
jax: 0.10.0
libtpu: 0.0.40
codegen_flags: <defaults>
</compile_context>

<pallas_src>
import jax
import jax.numpy as jnp
from jax import lax
from jax.experimental import pallas as pl
from jax.experimental.pallas import tpu as pltpu


def _ibasic_kernel(x_ref, bw1_ref, bw2_ref,
                   s1_ref, b1_ref, s2_ref, b2_ref, s3_ref, b3_ref, alpha_ref,
                   o_ref):
    Bblk, H, WC = x_ref.shape
    WCout = o_ref.shape[2]
    M = Bblk * H

    def im2col(t):
        # t: (Bblk, H, WC) f32 activations -> (M, 3*WC) bf16 lhs with the
        # vertical (padding=1) halo baked in: [row h-1 | row h | row h+1].
        # Horizontal padding lives inside the banded weights, so no left/right
        # halo is needed.  Lane-axis concat is at 128-multiples (aligned).
        z = jnp.zeros((Bblk, 1, WC), jnp.float32)
        up = jnp.concatenate([z, t[:, :H - 1, :]], axis=1)   # input row h-1
        dn = jnp.concatenate([t[:, 1:, :], z], axis=1)       # input row h+1
        cat = jnp.concatenate([up, t, dn], axis=-1)          # (Bblk, H, 3*WC)
        return cat.astype(jnp.bfloat16).reshape(M, 3 * WC)

    # ---- bn1 (folded, eval mode) + conv1 as a single K=3*WC bf16 MXU matmul ----
    t1 = x_ref[...].astype(jnp.float32) * s1_ref[...] + b1_ref[...]
    c1 = jnp.dot(im2col(t1), bw1_ref[...], preferred_element_type=jnp.float32)

    # ---- bn2 + per-channel PReLU (f32 VPU) ----
    t2 = c1 * s2_ref[...] + b2_ref[...]
    t2 = jnp.where(t2 > 0, t2, alpha_ref[...] * t2)

    # ---- conv2 (same fused-K formulation) ----
    c2 = jnp.dot(im2col(t2.reshape(Bblk, H, WCout)), bw2_ref[...],
                 preferred_element_type=jnp.float32)

    # ---- bn3 + identity residual (re-read x: keeps vreg pressure low) ----
    res = x_ref[...].astype(jnp.float32).reshape(M, WC)
    out = c2 * s3_ref[...] + b3_ref[...] + res
    o_ref[...] = out.reshape(Bblk, H, WCout).astype(o_ref.dtype)


def _band_weights(w_oihw, width):
    """OIHW (Cout, Cin, 3, 3) conv weight -> (3*width*Cin, width*Cout) banded
    matrix with the horizontal padding=1 structure baked in and the 3 vertical
    taps (ky) stacked along K to match the kernel's [up | center | down] lhs.
    Pure jnp: traces / jits / constant-folds, no host sync or numpy loops."""
    w = jnp.transpose(w_oihw, (2, 3, 1, 0)).astype(jnp.float32)  # (3, 3, Cin, Cout)
    kh, kw, cin, cout = w.shape
    xin = jnp.arange(width)
    xout = jnp.arange(width)
    kx = jnp.arange(kw)
    # mask[kx, a, b] = 1 iff input column a feeds output column b at tap kx (pad=1)
    mask = (xin[None, :, None] == xout[None, None, :] + kx[:, None, None] - 1)
    bw = jnp.einsum('kab,ykio->yaibo', mask.astype(jnp.float32), w)
    return bw.reshape(kh * width * cin, width * cout)


def ibasic_block(x_nchw, w1_oihw, w2_oihw, bn1, bn2, bn3, alpha,
                 *, stride=1, downsample=None, eps=1e-5):
    if stride != 1 or downsample is not None:
        # TODO(synk): stride>1 / downsample projection path not implemented
        # (test instance uses stride=1, downsample=None).
        raise NotImplementedError("only stride=1, downsample=None supported")

    B, C, H, W = x_nchw.shape
    Cout = w1_oihw.shape[0]
    if Cout != C or w2_oihw.shape != (Cout, Cout, 3, 3):
        raise NotImplementedError("identity residual requires inplanes == planes")
    if W * max(C, Cout) > 512:
        # TODO(synk): banded weights inflate MXU FLOPs by ~W/3 and grow as
        # O((W*C)^2); for larger shapes switch to a channel-blocked im2col
        # contraction (K=9*Cin, Cout-tiled N, Buffered(1) weight specs) so the
        # weights fit v7x's 64 MiB VMEM and the MXU does no structural-zero work.
        raise NotImplementedError("banded-weight path is gated to small W*C")

    # Layout glue (network boundary only): NCHW -> lane-dense (B, H, W*C).
    # TODO(synk): keep this packed layout across consecutive IBasicBlocks and
    # only convert at the network edges; these transposes are HBM round-trips
    # comparable to the fused kernel itself at this size.
    x_rows = jnp.transpose(x_nchw, (0, 2, 3, 1)).reshape(B, H, W * C)

    # Banded weights: pure-jnp build (cache once per layer in a real network),
    # cast to bf16 -> native MXU dtype + half the dominant weight DMA bytes.
    bw1 = _band_weights(w1_oihw, W).astype(jnp.bfloat16)   # (3*W*C,    W*Cout)
    bw2 = _band_weights(w2_oihw, W).astype(jnp.bfloat16)   # (3*W*Cout, W*Cout)

    def fold(gamma, beta, mean, var):
        s = (gamma / jnp.sqrt(var + eps)).astype(jnp.float32)
        b = (beta - mean * s).astype(jnp.float32)
        # lane-dense (1, W*C) rows matching the (x*C + c) activation packing
        return jnp.tile(s, W).reshape(1, -1), jnp.tile(b, W).reshape(1, -1)

    s1, b1 = fold(*bn1)
    s2, b2 = fold(*bn2)
    s3, b3 = fold(*bn3)
    a_row = jnp.tile(alpha.astype(jnp.float32), W).reshape(1, -1)

    WC, WCout = W * C, W * Cout
    vec = lambda n: pl.BlockSpec((1, n), lambda b: (0, 0))

    out_rows = pl.pallas_call(
        _ibasic_kernel,
        out_shape=jax.ShapeDtypeStruct((B, H, WCout), x_nchw.dtype),
        grid_spec=pltpu.PrefetchScalarGridSpec(
            num_scalar_prefetch=0,
            grid=(B,),   # one image per step; per-image vertical halo -> independent tiles
            in_specs=[
                pl.BlockSpec((1, H, WC), lambda b: (b, 0, 0)),        # activations
                pl.BlockSpec((3 * WC, WCout), lambda b: (0, 0)),      # banded w1 (stays resident)
                pl.BlockSpec((3 * WCout, WCout), lambda b: (0, 0)),   # banded w2 (stays resident)
                vec(WC), vec(WC),            # bn1 scale / bias
                vec(WCout), vec(WCout),      # bn2 scale / bias
                vec(WCout), vec(WCout),      # bn3 scale / bias
                vec(WCout),                  # prelu alpha
            ],
            out_specs=pl.BlockSpec((1, H, WCout), lambda b: (b, 0, 0)),
        ),
        compiler_params=pltpu.CompilerParams(
            dimension_semantics=("parallel",)),   # shards over v7x's 2 TCs, overlaps DMA
    )(x_rows, bw1, bw2, s1, b1, s2, b2, s3, b3, a_row)

    # (B, H, W*Cout) -> NCHW
    return jnp.transpose(out_rows.reshape(B, H, W, Cout), (0, 3, 1, 2))


def ref_forward(x, w1_oihw, w2_oihw, bn1, bn2, bn3, alpha,
                matmul_dtype=jnp.float32):
    """Pure-JAX reference of IBasicBlock.forward (eval-mode BN), NCHW.
    matmul_dtype=bfloat16 mirrors the kernel's bf16 MXU operands (f32 accum)."""
    eps = 1e-5

    def bn(v, p):
        g, b, m, var = p
        s = g / jnp.sqrt(var + eps)
        return v * s[None, :, None, None] + (b - m * s)[None, :, None, None]

    def conv(v, w):
        return lax.conv_general_dilated(
            v.astype(matmul_dtype), w.astype(matmul_dtype), (1, 1),
            ((1, 1), (1, 1)), dimension_numbers=('NCHW', 'OIHW', 'NCHW'),
            preferred_element_type=jnp.float32)

    out = bn(x, bn1)
    out = conv(out, w1_oihw)
    out = bn(out, bn2)
    out = jnp.where(out > 0, out, alpha[None, :, None, None] * out)
    out = conv(out, w2_oihw)
    out = bn(out, bn3)
    return out + x


if __name__ == "__main__":
    key = jax.random.PRNGKey(0)
    B, C, H, W = 2, 8, 16, 16   # inplanes = planes = 8, stride = 1 -> W*C = 128 (lane-dense)
    ks = jax.random.split(key, 8)

    x = jax.random.normal(ks[0], (B, C, H, W), jnp.float32)          # NCHW
    w1 = 0.1 * jax.random.normal(ks[1], (C, C, 3, 3), jnp.float32)   # OIHW
    w2 = 0.1 * jax.random.normal(ks[2], (C, C, 3, 3), jnp.float32)   # OIHW

    def bn_params(k):
        k1, k2, k3, k4 = jax.random.split(k, 4)
        gamma = 1.0 + 0.1 * jax.random.normal(k1, (C,), jnp.float32)
        beta = 0.1 * jax.random.normal(k2, (C,), jnp.float32)
        mean = 0.1 * jax.random.normal(k3, (C,), jnp.float32)
        var = jax.random.uniform(k4, (C,), jnp.float32, 0.5, 1.5)
        return gamma, beta, mean, var

    bn1 = bn_params(ks[3])
    bn2 = bn_params(ks[4])
    bn3 = bn_params(ks[5])
    alpha = 0.25 + 0.01 * jax.random.normal(ks[6], (C,), jnp.float32)

    out = ibasic_block(x, w1, w2, bn1, bn2, bn3, alpha)
    jax.block_until_ready(out)

    # Tight check vs a reference using the same bf16 MXU operands (verifies the
    # banded-weight / halo / BN / PReLU / residual wiring exactly).
    ref_bf = ref_forward(x, w1, w2, bn1, bn2, bn3, alpha, matmul_dtype=jnp.bfloat16)
    err_bf = float(jnp.max(jnp.abs(out - ref_bf)))
    assert jnp.allclose(out, ref_bf, atol=5e-3, rtol=5e-3), f"bf16-mirror max err {err_bf}"

    # Loose check vs the exact f32 module semantics (difference = bf16 rounding only).
    ref32 = ref_forward(x, w1, w2, bn1, bn2, bn3, alpha)
    err32 = float(jnp.max(jnp.abs(out - ref32)))
    assert jnp.allclose(out, ref32, atol=5e-2, rtol=5e-2), f"f32-ref max err {err32}"

    print("KERNEL_OK")
</pallas_src>

<mosaic_0001>
module attributes {stable_mosaic.version = 11 : i64} {
  func.func @_ibasic_kernel(%arg0: i32, %arg1: memref<1x16x128xf32, #tpu.memory_space<vmem>>, %arg2: memref<384x128xbf16, #tpu.memory_space<vmem>>, %arg3: memref<384x128xbf16, #tpu.memory_space<vmem>>, %arg4: memref<1x128xf32, #tpu.memory_space<vmem>>, %arg5: memref<1x128xf32, #tpu.memory_space<vmem>>, %arg6: memref<1x128xf32, #tpu.memory_space<vmem>>, %arg7: memref<1x128xf32, #tpu.memory_space<vmem>>, %arg8: memref<1x128xf32, #tpu.memory_space<vmem>>, %arg9: memref<1x128xf32, #tpu.memory_space<vmem>>, %arg10: memref<1x128xf32, #tpu.memory_space<vmem>>, %arg11: memref<1x16x128xf32, #tpu.memory_space<vmem>>) attributes {dimension_semantics = [#tpu.dimension_semantics<parallel>], iteration_bounds = array<i64: 2>, scalar_prefetch = 0 : i64, scratch_operands = 0 : i64, tpu.core_type = #tpu.core_type<tc>, window_params = [{transform_indices = @transform_0, window_bounds = array<i64: 1, 16, 128>}, {pipeline_mode = #tpu.pipeline_mode<synchronous>, transform_indices = @transform_1, window_bounds = array<i64: 384, 128>}, {pipeline_mode = #tpu.pipeline_mode<synchronous>, transform_indices = @transform_2, window_bounds = array<i64: 384, 128>}, {pipeline_mode = #tpu.pipeline_mode<synchronous>, transform_indices = @transform_3, window_bounds = array<i64: 1, 128>}, {pipeline_mode = #tpu.pipeline_mode<synchronous>, transform_indices = @transform_4, window_bounds = array<i64: 1, 128>}, {pipeline_mode = #tpu.pipeline_mode<synchronous>, transform_indices = @transform_5, window_bounds = array<i64: 1, 128>}, {pipeline_mode = #tpu.pipeline_mode<synchronous>, transform_indices = @transform_6, window_bounds = array<i64: 1, 128>}, {pipeline_mode = #tpu.pipeline_mode<synchronous>, transform_indices = @transform_7, window_bounds = array<i64: 1, 128>}, {pipeline_mode = #tpu.pipeline_mode<synchronous>, transform_indices = @transform_8, window_bounds = array<i64: 1, 128>}, {pipeline_mode = #tpu.pipeline_mode<synchronous>, transform_indices = @transform_9, window_bounds = array<i64: 1, 128>}, {transform_indices = @transform_10, window_bounds = array<i64: 1, 16, 128>}]} {
    %c0 = arith.constant 0 : index
    %c0_0 = arith.constant 0 : index
    %c0_1 = arith.constant 0 : index
    %0 = vector.load %arg1[%c0, %c0_0, %c0_1] : memref<1x16x128xf32, #tpu.memory_space<vmem>>, vector<1x16x128xf32>
    %c0_2 = arith.constant 0 : index
    %c0_3 = arith.constant 0 : index
    %1 = vector.load %arg4[%c0_2, %c0_3] : memref<1x128xf32, #tpu.memory_space<vmem>>, vector<1x128xf32>
    %2 = vector.shape_cast %1 : vector<1x128xf32> to vector<1x1x128xf32>
    %3 = vector.broadcast %2 : vector<1x1x128xf32> to vector<1x16x128xf32>
    %4 = arith.mulf %0, %3 : vector<1x16x128xf32>
    %c0_4 = arith.constant 0 : index
    %c0_5 = arith.constant 0 : index
    %5 = vector.load %arg5[%c0_4, %c0_5] : memref<1x128xf32, #tpu.memory_space<vmem>>, vector<1x128xf32>
    %6 = vector.shape_cast %5 : vector<1x128xf32> to vector<1x1x128xf32>
    %7 = vector.broadcast %6 : vector<1x1x128xf32> to vector<1x16x128xf32>
    %8 = arith.addf %4, %7 : vector<1x16x128xf32>
    %cst = arith.constant 0.000000e+00 : f32
    %9 = vector.broadcast %cst : f32 to vector<1x1x128xf32>
    %10 = vector.extract_strided_slice %8 {offsets = [0, 0, 0], sizes = [1, 15, 128], strides = [1, 1, 1]} : vector<1x16x128xf32> to vector<1x15x128xf32>
    %11 = tpu.concatenate %9, %10 in 1 : vector<1x1x128xf32>, vector<1x15x128xf32> -> vector<1x16x128xf32>
    %12 = vector.extract_strided_slice %8 {offsets = [0, 1, 0], sizes = [1, 15, 128], strides = [1, 1, 1]} : vector<1x16x128xf32> to vector<1x15x128xf32>
    %13 = tpu.concatenate %12, %9 in 1 : vector<1x15x128xf32>, vector<1x1x128xf32> -> vector<1x16x128xf32>
    %14 = tpu.concatenate %11, %8, %13 in 2 : vector<1x16x128xf32>, vector<1x16x128xf32>, vector<1x16x128xf32> -> vector<1x16x384xf32>
    %15 = arith.truncf %14 : vector<1x16x384xf32> to vector<1x16x384xbf16>
    %16 = vector.shape_cast %15 : vector<1x16x384xbf16> to vector<16x384xbf16>
    %c0_6 = arith.constant 0 : index
    %c0_7 = arith.constant 0 : index
    %17 = vector.load %arg2[%c0_6, %c0_7] : memref<384x128xbf16, #tpu.memory_space<vmem>>, vector<384x128xbf16>
    %cst_8 = arith.constant dense<0.000000e+00> : vector<16x128xf32>
    %18 = tpu.matmul %16, %17, %cst_8 {dimension_numbers = #tpu.dot_dimension_numbers<[1], [0], [0], [1], [0, 0, 1, 1], [], []>} : vector<16x384xbf16>, vector<384x128xbf16>, vector<16x128xf32> -> vector<16x128xf32>
    %c0_9 = arith.constant 0 : index
    %c0_10 = arith.constant 0 : index
    %19 = vector.load %arg6[%c0_9, %c0_10] : memref<1x128xf32, #tpu.memory_space<vmem>>, vector<1x128xf32>
    %20 = vector.broadcast %19 : vector<1x128xf32> to vector<16x128xf32>
    %21 = arith.mulf %18, %20 : vector<16x128xf32>
    %c0_11 = arith.constant 0 : index
    %c0_12 = arith.constant 0 : index
    %22 = vector.load %arg7[%c0_11, %c0_12] : memref<1x128xf32, #tpu.memory_space<vmem>>, vector<1x128xf32>
    %23 = vector.broadcast %22 : vector<1x128xf32> to vector<16x128xf32>
    %24 = arith.addf %21, %23 : vector<16x128xf32>
    %cst_13 = arith.constant 0.000000e+00 : f32
    %25 = vector.broadcast %cst_13 : f32 to vector<16x128xf32>
    %26 = arith.cmpf ogt, %24, %25 : vector<16x128xf32>
    %c0_14 = arith.constant 0 : index
    %c0_15 = arith.constant 0 : index
    %27 = vector.load %arg10[%c0_14, %c0_15] : memref<1x128xf32, #tpu.memory_space<vmem>>, vector<1x128xf32>
    %28 = vector.broadcast %27 : vector<1x128xf32> to vector<16x128xf32>
    %29 = arith.mulf %28, %24 : vector<16x128xf32>
    %30 = arith.select %26, %24, %29 : vector<16x128xi1>, vector<16x128xf32>
    %31 = vector.shape_cast %30 : vector<16x128xf32> to vector<1x16x128xf32>
    %cst_16 = arith.constant 0.000000e+00 : f32
    %32 = vector.broadcast %cst_16 : f32 to vector<1x1x128xf32>
    %33 = vector.extract_strided_slice %31 {offsets = [0, 0, 0], sizes = [1, 15, 128], strides = [1, 1, 1]} : vector<1x16x128xf32> to vector<1x15x128xf32>
    %34 = tpu.concatenate %32, %33 in 1 : vector<1x1x128xf32>, vector<1x15x128xf32> -> vector<1x16x128xf32>
    %35 = vector.extract_strided_slice %31 {offsets = [0, 1, 0], sizes = [1, 15, 128], strides = [1, 1, 1]} : vector<1x16x128xf32> to vector<1x15x128xf32>
    %36 = tpu.concatenate %35, %32 in 1 : vector<1x15x128xf32>, vector<1x1x128xf32> -> vector<1x16x128xf32>
    %37 = tpu.concatenate %34, %31, %36 in 2 : vector<1x16x128xf32>, vector<1x16x128xf32>, vector<1x16x128xf32> -> vector<1x16x384xf32>
    %38 = arith.truncf %37 : vector<1x16x384xf32> to vector<1x16x384xbf16>
    %39 = vector.shape_cast %38 : vector<1x16x384xbf16> to vector<16x384xbf16>
    %c0_17 = arith.constant 0 : index
    %c0_18 = arith.constant 0 : index
    %40 = vector.load %arg3[%c0_17, %c0_18] : memref<384x128xbf16, #tpu.memory_space<vmem>>, vector<384x128xbf16>
    %cst_19 = arith.constant dense<0.000000e+00> : vector<16x128xf32>
    %41 = tpu.matmul %39, %40, %cst_19 {dimension_numbers = #tpu.dot_dimension_numbers<[1], [0], [0], [1], [0, 0, 1, 1], [], []>} : vector<16x384xbf16>, vector<384x128xbf16>, vector<16x128xf32> -> vector<16x128xf32>
    %c0_20 = arith.constant 0 : index
    %c0_21 = arith.constant 0 : index
    %c0_22 = arith.constant 0 : index
    %42 = vector.load %arg1[%c0_20, %c0_21, %c0_22] : memref<1x16x128xf32, #tpu.memory_space<vmem>>, vector<1x16x128xf32>
    %43 = vector.shape_cast %42 : vector<1x16x128xf32> to vector<16x128xf32>
    %c0_23 = arith.constant 0 : index
    %c0_24 = arith.constant 0 : index
    %44 = vector.load %arg8[%c0_23, %c0_24] : memref<1x128xf32, #tpu.memory_space<vmem>>, vector<1x128xf32>
    %45 = vector.broadcast %44 : vector<1x128xf32> to vector<16x128xf32>
    %46 = arith.mulf %41, %45 : vector<16x128xf32>
    %c0_25 = arith.constant 0 : index
    %c0_26 = arith.constant 0 : index
    %47 = vector.load %arg9[%c0_25, %c0_26] : memref<1x128xf32, #tpu.memory_space<vmem>>, vector<1x128xf32>
    %48 = vector.broadcast %47 : vector<1x128xf32> to vector<16x128xf32>
    %49 = arith.addf %46, %48 : vector<16x128xf32>
    %50 = arith.addf %49, %43 : vector<16x128xf32>
    %51 = vector.shape_cast %50 : vector<16x128xf32> to vector<1x16x128xf32>
    %c0_27 = arith.constant 0 : index
    %c0_28 = arith.constant 0 : index
    %c0_29 = arith.constant 0 : index
    %52 = vector.load %arg11[%c0_27, %c0_28, %c0_29] : memref<1x16x128xf32, #tpu.memory_space<vmem>>, vector<1x16x128xf32>
    tpu.vector_store %arg11[%c0_27, %c0_28, %c0_29], %51 {strides = array<i32>} : memref<1x16x128xf32, #tpu.memory_space<vmem>>, vector<1x16x128xf32>,
    return
  }
  func.func @transform_0(%arg0: i32) -> (i32, i32, i32) {
    %c0_i32 = arith.constant 0 : i32
    %c0_i32_0 = arith.constant 0 : i32
    %c0_i32_1 = arith.constant 0 : i32
    return %arg0, %c0_i32, %c0_i32_0 : i32, i32, i32
  }
  func.func @transform_1(%arg0: i32) -> (i32, i32) {
    %c0_i32 = arith.constant 0 : i32
    %c0_i32_0 = arith.constant 0 : i32
    %c0_i32_1 = arith.constant 0 : i32
    return %c0_i32, %c0_i32_0 : i32, i32
  }
  func.func @transform_2(%arg0: i32) -> (i32, i32) {
    %c0_i32 = arith.constant 0 : i32
    %c0_i32_0 = arith.constant 0 : i32
    %c0_i32_1 = arith.constant 0 : i32
    return %c0_i32, %c0_i32_0 : i32, i32
  }
  func.func @transform_3(%arg0: i32) -> (i32, i32) {
    %c0_i32 = arith.constant 0 : i32
    %c0_i32_0 = arith.constant 0 : i32
    %c0_i32_1 = arith.constant 0 : i32
    return %c0_i32, %c0_i32_0 : i32, i32
  }
  func.func @transform_4(%arg0: i32) -> (i32, i32) {
    %c0_i32 = arith.constant 0 : i32
    %c0_i32_0 = arith.constant 0 : i32
    %c0_i32_1 = arith.constant 0 : i32
    return %c0_i32, %c0_i32_0 : i32, i32
  }
  func.func @transform_5(%arg0: i32) -> (i32, i32) {
    %c0_i32 = arith.constant 0 : i32
    %c0_i32_0 = arith.constant 0 : i32
    %c0_i32_1 = arith.constant 0 : i32
    return %c0_i32, %c0_i32_0 : i32, i32
  }
  func.func @transform_6(%arg0: i32) -> (i32, i32) {
    %c0_i32 = arith.constant 0 : i32
    %c0_i32_0 = arith.constant 0 : i32
    %c0_i32_1 = arith.constant 0 : i32
    return %c0_i32, %c0_i32_0 : i32, i32
  }
  func.func @transform_7(%arg0: i32) -> (i32, i32) {
    %c0_i32 = arith.constant 0 : i32
    %c0_i32_0 = arith.constant 0 : i32
    %c0_i32_1 = arith.constant 0 : i32
    return %c0_i32, %c0_i32_0 : i32, i32
  }
  func.func @transform_8(%arg0: i32) -> (i32, i32) {
    %c0_i32 = arith.constant 0 : i32
    %c0_i32_0 = arith.constant 0 : i32
    %c0_i32_1 = arith.constant 0 : i32
    return %c0_i32, %c0_i32_0 : i32, i32
  }
  func.func @transform_9(%arg0: i32) -> (i32, i32) {
    %c0_i32 = arith.constant 0 : i32
    %c0_i32_0 = arith.constant 0 : i32
    %c0_i32_1 = arith.constant 0 : i32
    return %c0_i32, %c0_i32_0 : i32, i32
  }
  func.func @transform_10(%arg0: i32) -> (i32, i32, i32) {
    %c0_i32 = arith.constant 0 : i32
    %c0_i32_0 = arith.constant 0 : i32
    %c0_i32_1 = arith.constant 0 : i32
    return %arg0, %c0_i32, %c0_i32_0 : i32, i32, i32
  }
}

</mosaic_0001>

<llo_original>
// kernel: tpu_custom_call.1
$region0: #{tpu_custom_call.1}
  #allocation0 [shape = 'u32[]', space=smem, size = 0x4, offset = 0x4, fixed_abs, tag = 'smem constant byte address 0x4 - core index']
  #allocation1 [shape = 'u32[144,128]{1,0:T(1,128)}', space=vmem, size = 0x12000, scoped, tag = 'internal scratch']
  %s0 = inlined_call_operand.hbm [shape: f32[2,16,128], index: 0, kind: input, shape index: {}]
  %s1 = inlined_call_operand.hbm [shape: bf16[384,128], index: 1, kind: input, shape index: {}]
  %s2 = inlined_call_operand.hbm [shape: bf16[384,128], index: 2, kind: input, shape index: {}]
  %s3 = inlined_call_operand.vmem [shape: f32[1,128], index: 3, kind: input, shape index: {}]
  %s4 = inlined_call_operand.vmem [shape: f32[1,128], index: 4, kind: input, shape index: {}]
  %s5 = inlined_call_operand.vmem [shape: f32[1,128], index: 5, kind: input, shape index: {}]
  %s6 = inlined_call_operand.vmem [shape: f32[1,128], index: 6, kind: input, shape index: {}]
  %s7 = inlined_call_operand.vmem [shape: f32[1,128], index: 7, kind: input, shape index: {}]
  %s8 = inlined_call_operand.vmem [shape: f32[1,128], index: 8, kind: input, shape index: {}]
  %s9 = inlined_call_operand.vmem [shape: f32[1,128], index: 9, kind: input, shape index: {}]
  %s10 = inlined_call_operand.hbm [shape: f32[2,16,128], index: 10, kind: output, shape index: {}]
  %s11 = sld [smem:[#allocation0]]
  $region85: #{tpu_custom_call.1} parent=0
    _
  %s13 = ssub.s32 1, %s11
  %s14 = scalar_select 0, %s13, %s11
  $region1: #{tpu_custom_call.1} parent=0
    #allocation2 [shape = 'u8[16384]{0}', space=vmem, size = 0x4000, scoped, tag = 'input window, operand 0']
    #allocation3 [shape = 's32[2]{0}', space=sflag, size = 0x8, scoped, tag = 'scoped memory for tpu_custom_call.1']
    #allocation4 [shape = 's32[2]{0}', space=sflag, size = 0x8, scoped, tag = 'scoped memory for tpu_custom_call.1']
    #allocation5 [shape = 'u8[98304]{0}', space=vmem, size = 0x18000, scoped, tag = 'input window, operand 1, single buffered']
    #allocation6 [shape = 's32[1]{0}', space=sflag, size = 0x4, scoped, tag = 'scoped memory for tpu_custom_call.1']
    #allocation7 [shape = 'u8[98304]{0}', space=vmem, size = 0x18000, scoped, tag = 'input window, operand 2, single buffered']
    #allocation8 [shape = 'u8[16384]{0}', space=vmem, size = 0x4000, scoped, tag = 'output window, operand 0']
    %15 = vsyncpa [#allocation3], 0
    %s16 = scalar_lea.sflag [#allocation3], 1
    %17 = vsyncpa %s16, 0
    %18 = vsyncpa [#allocation6], 0
    %19 = vsyncpa [#allocation4], 0
    %s20 = scalar_lea.sflag [#allocation4], 1
    %21 = vsyncpa %s20, 0
    loop: start=0, step=1, limit=4
    $region2: #{tpu_custom_call.1} parent=1 // loop_pre_header
      _
    $region3: #{tpu_custom_call.1} parent=1 // loop_header
      %s23 = sphi 0, %s27
      %p24 = scmp.ge.s32.totalorder %s23, 4
      %s33 = sphi 0, %s35
      %s36 = sphi 0, %s33
      %s37 = sphi 0, %s36
      %s53 = sphi 0, %s37
      %s57 = sphi 0, %s57
      %s59 = sphi 0, %s57
      %s60 = sphi 0, %s59
      %s74 = sphi 0, %s60
      %s78 = sphi 0, %s78
      %s80 = sphi 0, %s78
      %s81 = sphi 0, %s80
      %s95 = sphi 0, %s81
      %s99 = sphi 0, %s99
      %s101 = sphi 0, %s99
      %s102 = sphi 0, %s101
      %s116 = sphi 0, %s102
      %s120 = sphi 0, %s120
      %s122 = sphi 0, %s120
      %s123 = sphi 0, %s122
      %s137 = sphi 0, %s123
      %s141 = sphi 0, %s141
      %s143 = sphi 0, %s141
      %s144 = sphi 0, %s143
      %s158 = sphi 0, %s144
      %s162 = sphi 0, %s162
      %s164 = sphi 0, %s162
      %s165 = sphi 0, %s164
      %s179 = sphi 0, %s165
      %s183 = sphi 0, %s183
      %s185 = sphi 0, %s183
      %s186 = sphi 0, %s185
      %s200 = sphi 0, %s186
      %s204 = sphi 0, %s204
      %s206 = sphi 0, %s204
      %s207 = sphi 0, %s206
      %s221 = sphi 0, %s207
      %s225 = sphi 0, %s225
      %s227 = sphi 0, %s225
      %s228 = sphi 0, %s227
      %s242 = sphi 0, %s228
      %s248 = sphi 0, %s250
      %s251 = sphi 0, %s248
      %s252 = sphi 0, %s251
      %s268 = sphi 0, %s252
    $region4: #{tpu_custom_call.1} parent=1 // loop_header_branch
      %26 = sbr.rel (%p24) target = $region8
    $region5: #{tpu_custom_call.1} parent=1 // loop_body
      %s28 = ssub.s32 %s23, 1
      %s29 = ssub.s32 %s23, 2
      %s30 = sadd.s32 %s23, 1
      %s31 = ssub.s32 %s23, %s30
      %p32 = scmp.eq.s32.totalorder %s31, 0
      %s34 = sadd.s32 %s33, 1
      %s35 = scalar_select %p32, %s33, %s34
      %p38 = pneg %p32
      %p39 = scmp.eq.s32.totalorder %s23, 1
      %p40 = por %p38, %p39
      %p41 = scmp.ne.s32.totalorder %s33, %s36
      %p42 = scmp.eq.s32.totalorder %s23, 0
      %p43 = por %p41, %p42
      %p44 = scmp.ne.s32.totalorder %s33, %s36
      %p45 = scmp.eq.s32.totalorder %s28, 1
      %p46 = por %p44, %p45
      %p47 = scmp.ne.s32.totalorder %s36, %s37
      %p48 = scmp.eq.s32.totalorder %s28, 0
      %p49 = por %p47, %p48
      %p50 = scmp.ne.s32.totalorder %s36, %s37
      %p51 = scmp.eq.s32.totalorder %s29, 1
      %p52 = por %p50, %p51
      %p54 = scmp.ne.s32.totalorder %s37, %s53
      %p55 = scmp.eq.s32.totalorder %s29, 0
      %p56 = por %p54, %p55
      %s58 = sadd.s32 %s57, 1
      %p61 = scmp.eq.s32.totalorder %s23, 1
      %p62 = scmp.ne.s32.totalorder %s57, %s59
      %p63 = scmp.eq.s32.totalorder %s23, 0
      %p64 = por %p62, %p63
      %p65 = scmp.ne.s32.totalorder %s57, %s59
      %p66 = scmp.eq.s32.totalorder %s28, 1
      %p67 = por %p65, %p66
      %p68 = scmp.ne.s32.totalorder %s59, %s60
      %p69 = scmp.eq.s32.totalorder %s28, 0
      %p70 = por %p68, %p69
      %p71 = scmp.ne.s32.totalorder %s59, %s60
      %p72 = scmp.eq.s32.totalorder %s29, 1
      %p73 = por %p71, %p72
      %p75 = scmp.ne.s32.totalorder %s60, %s74
      %p76 = scmp.eq.s32.totalorder %s29, 0
      %p77 = por %p75, %p76
      %s79 = sadd.s32 %s78, 1
      %p82 = scmp.eq.s32.totalorder %s23, 1
      %p83 = scmp.ne.s32.totalorder %s78, %s80
      %p84 = scmp.eq.s32.totalorder %s23, 0
      %p85 = por %p83, %p84
      %p86 = scmp.ne.s32.totalorder %s78, %s80
      %p87 = scmp.eq.s32.totalorder %s28, 1
      %p88 = por %p86, %p87
      %p89 = scmp.ne.s32.totalorder %s80, %s81
      %p90 = scmp.eq.s32.totalorder %s28, 0
      %p91 = por %p89, %p90
      %p92 = scmp.ne.s32.totalorder %s80, %s81
      %p93 = scmp.eq.s32.totalorder %s29, 1
      %p94 = por %p92, %p93
      %p96 = scmp.ne.s32.totalorder %s81, %s95
      %p97 = scmp.eq.s32.totalorder %s29, 0
      %p98 = por %p96, %p97
      %s100 = sadd.s32 %s99, 1
      %p103 = scmp.eq.s32.totalorder %s23, 1
      %p104 = scmp.ne.s32.totalorder %s99, %s101
      %p105 = scmp.eq.s32.totalorder %s23, 0
      %p106 = por %p104, %p105
      %p107 = scmp.ne.s32.totalorder %s99, %s101
      %p108 = scmp.eq.s32.totalorder %s28, 1
      %p109 = por %p107, %p108
      %p110 = scmp.ne.s32.totalorder %s101, %s102
      %p111 = scmp.eq.s32.totalorder %s28, 0
      %p112 = por %p110, %p111
      %p113 = scmp.ne.s32.totalorder %s101, %s102
      %p114 = scmp.eq.s32.totalorder %s29, 1
      %p115 = por %p113, %p114
      %p117 = scmp.ne.s32.totalorder %s102, %s116
      %p118 = scmp.eq.s32.totalorder %s29, 0
      %p119 = por %p117, %p118
      %s121 = sadd.s32 %s120, 1
      %p124 = scmp.eq.s32.totalorder %s23, 1
      %p125 = scmp.ne.s32.totalorder %s120, %s122
      %p126 = scmp.eq.s32.totalorder %s23, 0
      %p127 = por %p125, %p126
      %p128 = scmp.ne.s32.totalorder %s120, %s122
      %p129 = scmp.eq.s32.totalorder %s28, 1
      %p130 = por %p128, %p129
      %p131 = scmp.ne.s32.totalorder %s122, %s123
      %p132 = scmp.eq.s32.totalorder %s28, 0
      %p133 = por %p131, %p132
      %p134 = scmp.ne.s32.totalorder %s122, %s123
      %p135 = scmp.eq.s32.totalorder %s29, 1
      %p136 = por %p134, %p135
      %p138 = scmp.ne.s32.totalorder %s123, %s137
      %p139 = scmp.eq.s32.totalorder %s29, 0
      %p140 = por %p138, %p139
      %s142 = sadd.s32 %s141, 1
      %p145 = scmp.eq.s32.totalorder %s23, 1
      %p146 = scmp.ne.s32.totalorder %s141, %s143
      %p147 = scmp.eq.s32.totalorder %s23, 0
      %p148 = por %p146, %p147
      %p149 = scmp.ne.s32.totalorder %s141, %s143
      %p150 = scmp.eq.s32.totalorder %s28, 1
      %p151 = por %p149, %p150
      %p152 = scmp.ne.s32.totalorder %s143, %s144
      %p153 = scmp.eq.s32.totalorder %s28, 0
      %p154 = por %p152, %p153
      %p155 = scmp.ne.s32.totalorder %s143, %s144
      %p156 = scmp.eq.s32.totalorder %s29, 1
      %p157 = por %p155, %p156
      %p159 = scmp.ne.s32.totalorder %s144, %s158
      %p160 = scmp.eq.s32.totalorder %s29, 0
      %p161 = por %p159, %p160
      %s163 = sadd.s32 %s162, 1
      %p166 = scmp.eq.s32.totalorder %s23, 1
      %p167 = scmp.ne.s32.totalorder %s162, %s164
      %p168 = scmp.eq.s32.totalorder %s23, 0
      %p169 = por %p167, %p168
      %p170 = scmp.ne.s32.totalorder %s162, %s164
      %p171 = scmp.eq.s32.totalorder %s28, 1
      %p172 = por %p170, %p171
      %p173 = scmp.ne.s32.totalorder %s164, %s165
      %p174 = scmp.eq.s32.totalorder %s28, 0
      %p175 = por %p173, %p174
      %p176 = scmp.ne.s32.totalorder %s164, %s165
      %p177 = scmp.eq.s32.totalorder %s29, 1
      %p178 = por %p176, %p177
      %p180 = scmp.ne.s32.totalorder %s165, %s179
      %p181 = scmp.eq.s32.totalorder %s29, 0
      %p182 = por %p180, %p181
      %s184 = sadd.s32 %s183, 1
      %p187 = scmp.eq.s32.totalorder %s23, 1
      %p188 = scmp.ne.s32.totalorder %s183, %s185
      %p189 = scmp.eq.s32.totalorder %s23, 0
      %p190 = por %p188, %p189
      %p191 = scmp.ne.s32.totalorder %s183, %s185
      %p192 = scmp.eq.s32.totalorder %s28, 1
      %p193 = por %p191, %p192
      %p194 = scmp.ne.s32.totalorder %s185, %s186
      %p195 = scmp.eq.s32.totalorder %s28, 0
      %p196 = por %p194, %p195
      %p197 = scmp.ne.s32.totalorder %s185, %s186
      %p198 = scmp.eq.s32.totalorder %s29, 1
      %p199 = por %p197, %p198
      %p201 = scmp.ne.s32.totalorder %s186, %s200
      %p202 = scmp.eq.s32.totalorder %s29, 0
      %p203 = por %p201, %p202
      %s205 = sadd.s32 %s204, 1
      %p208 = scmp.eq.s32.totalorder %s23, 1
      %p209 = scmp.ne.s32.totalorder %s204, %s206
      %p210 = scmp.eq.s32.totalorder %s23, 0
      %p211 = por %p209, %p210
      %p212 = scmp.ne.s32.totalorder %s204, %s206
      %p213 = scmp.eq.s32.totalorder %s28, 1
      %p214 = por %p212, %p213
      %p215 = scmp.ne.s32.totalorder %s206, %s207
      %p216 = scmp.eq.s32.totalorder %s28, 0
      %p217 = por %p215, %p216
      %p218 = scmp.ne.s32.totalorder %s206, %s207
      %p219 = scmp.eq.s32.totalorder %s29, 1
      %p220 = por %p218, %p219
      %p222 = scmp.ne.s32.totalorder %s207, %s221
      %p223 = scmp.eq.s32.totalorder %s29, 0
      %p224 = por %p222, %p223
      %s226 = sadd.s32 %s225, 1
      %p229 = scmp.eq.s32.totalorder %s23, 1
      %p230 = scmp.ne.s32.totalorder %s225, %s227
      %p231 = scmp.eq.s32.totalorder %s23, 0
      %p232 = por %p230, %p231
      %p233 = scmp.ne.s32.totalorder %s225, %s227
      %p234 = scmp.eq.s32.totalorder %s28, 1
      %p235 = por %p233, %p234
      %p236 = scmp.ne.s32.totalorder %s227, %s228
      %p237 = scmp.eq.s32.totalorder %s28, 0
      %p238 = por %p236, %p237
      %p239 = scmp.ne.s32.totalorder %s227, %s228
      %p240 = scmp.eq.s32.totalorder %s29, 1
      %p241 = por %p239, %p240
      %p243 = scmp.ne.s32.totalorder %s228, %s242
      %p244 = scmp.eq.s32.totalorder %s29, 0
      %p245 = por %p243, %p244
      %s246 = ssub.s32 %s23, %s30
      %p247 = scmp.eq.s32.totalorder %s246, 0
      %s249 = sadd.s32 %s248, 1
      %s250 = scalar_select %p247, %s248, %s249
      %p253 = pneg %p247
      %p254 = scmp.eq.s32.totalorder %s23, 1
      %p255 = por %p253, %p254
      %p256 = scmp.ne.s32.totalorder %s248, %s251
      %p257 = scmp.eq.s32.totalorder %s23, 0
      %p258 = por %p256, %p257
      %p259 = scmp.ne.s32.totalorder %s248, %s251
      %p260 = scmp.eq.s32.totalorder %s28, 1
      %p261 = por %p259, %p260
      %p262 = scmp.ne.s32.totalorder %s251, %s252
      %p263 = scmp.eq.s32.totalorder %s28, 0
      %p264 = por %p262, %p263
      %p265 = scmp.ne.s32.totalorder %s251, %s252
      %p266 = scmp.eq.s32.totalorder %s29, 1
      %p267 = por %p265, %p266
      %p269 = scmp.ne.s32.totalorder %s252, %s268
      %p270 = scmp.eq.s32.totalorder %s29, 0
      %p271 = por %p269, %p270
      %p272 = scmp.le.s32.totalorder 1, %s23
      %p273 = scmp.lt.s32.totalorder %s23, 3
      %p274 = pnand %p272, %p273
      %p275 = pneg %p274
      // Predicated region
      $region9: #{tpu_custom_call.1} parent=5 // pred_check
        _
      $region10: #{tpu_custom_call.1} parent=5 // pred_check_branch
        %277 = sbr.rel (%p274) target = $region12
      $region11: #{tpu_custom_call.1} parent=5 // pred_region
        %s278 = ssub.s32 %s23, 1
        // Predicated region
        $region13: #{tpu_custom_call.1} parent=11 // pred_check
          %p279 = pneg %p70
        $region14: #{tpu_custom_call.1} parent=11 // pred_check_branch
          %281 = sbr.rel (%p279) target = $region16
        $region15: #{tpu_custom_call.1} parent=11 // pred_region
          %s283 = ssub.s32 3072, 3072
          %284 = vsyncadd [#allocation6], %s283
          %s285 = sshll.u32 [#allocation5], 4
          %s286 = int_to_ptr.vmem [resolvable:$true] %s285
          %291 = dma.hbm_to_vmem [thread:$0]  %s1, 3072, %s286, [#allocation6], 64, 64, 4
        $region16: #{tpu_custom_call.1} parent=11 // pred_fallthru
          _
        // Predicated region
        $region17: #{tpu_custom_call.1} parent=11 // pred_check
          %p292 = pneg %p91
        $region18: #{tpu_custom_call.1} parent=11 // pred_check_branch
          %294 = sbr.rel (%p292) target = $region20
        $region19: #{tpu_custom_call.1} parent=11 // pred_region
          %s296 = ssub.s32 3072, 3072
          %297 = vsyncadd [#allocation6], %s296
          %s298 = sshll.u32 [#allocation7], 4
          %s299 = int_to_ptr.vmem [resolvable:$true] %s298
          %304 = dma.hbm_to_vmem [thread:$0]  %s2, 3072, %s299, [#allocation6], 64, 64, 4
        $region20: #{tpu_custom_call.1} parent=11 // pred_fallthru
          _
        // Predicated region
        $region21: #{tpu_custom_call.1} parent=11 // pred_check
          %p305 = pneg %p112
        $region22: #{tpu_custom_call.1} parent=11 // pred_check_branch
          %307 = sbr.rel (%p305) target = $region24
        $region23: #{tpu_custom_call.1} parent=11 // pred_region
          _
        $region24: #{tpu_custom_call.1} parent=11 // pred_fallthru
          _
        // Predicated region
        $region25: #{tpu_custom_call.1} parent=11 // pred_check
          %p308 = pneg %p133
        $region26: #{tpu_custom_call.1} parent=11 // pred_check_branch
          %310 = sbr.rel (%p308) target = $region28
        $region27: #{tpu_custom_call.1} parent=11 // pred_region
          _
        $region28: #{tpu_custom_call.1} parent=11 // pred_fallthru
          _
        // Predicated region
        $region29: #{tpu_custom_call.1} parent=11 // pred_check
          %p311 = pneg %p154
        $region30: #{tpu_custom_call.1} parent=11 // pred_check_branch
          %313 = sbr.rel (%p311) target = $region32
        $region31: #{tpu_custom_call.1} parent=11 // pred_region
          _
        $region32: #{tpu_custom_call.1} parent=11 // pred_fallthru
          _
        // Predicated region
        $region33: #{tpu_custom_call.1} parent=11 // pred_check
          %p314 = pneg %p175
        $region34: #{tpu_custom_call.1} parent=11 // pred_check_branch
          %316 = sbr.rel (%p314) target = $region36
        $region35: #{tpu_custom_call.1} parent=11 // pred_region
          _
        $region36: #{tpu_custom_call.1} parent=11 // pred_fallthru
          _
        // Predicated region
        $region37: #{tpu_custom_call.1} parent=11 // pred_check
          %p317 = pneg %p196
        $region38: #{tpu_custom_call.1} parent=11 // pred_check_branch
          %319 = sbr.rel (%p317) target = $region40
        $region39: #{tpu_custom_call.1} parent=11 // pred_region
          _
        $region40: #{tpu_custom_call.1} parent=11 // pred_fallthru
          _
        // Predicated region
        $region41: #{tpu_custom_call.1} parent=11 // pred_check
          %p320 = pneg %p217
        $region42: #{tpu_custom_call.1} parent=11 // pred_check_branch
          %322 = sbr.rel (%p320) target = $region44
        $region43: #{tpu_custom_call.1} parent=11 // pred_region
          _
        $region44: #{tpu_custom_call.1} parent=11 // pred_fallthru
          _
        // Predicated region
        $region45: #{tpu_custom_call.1} parent=11 // pred_check
          %p323 = pneg %p238
        $region46: #{tpu_custom_call.1} parent=11 // pred_check_branch
          %325 = sbr.rel (%p323) target = $region48
        $region47: #{tpu_custom_call.1} parent=11 // pred_region
          _
        $region48: #{tpu_custom_call.1} parent=11 // pred_fallthru
          _
      $region12: #{tpu_custom_call.1} parent=5 // pred_fallthru
        _
      %p326 = scmp.lt.s32.totalorder %s23, 2
      // Predicated region
      $region49: #{tpu_custom_call.1} parent=5 // pred_check
        %p327 = pneg %p326
      $region50: #{tpu_custom_call.1} parent=5 // pred_check_branch
        %329 = sbr.rel (%p327) target = $region52
      $region51: #{tpu_custom_call.1} parent=5 // pred_region
        // Predicated region
        $region53: #{tpu_custom_call.1} parent=51 // pred_check
          %p330 = pneg %p43
        $region54: #{tpu_custom_call.1} parent=51 // pred_check_branch
          %332 = sbr.rel (%p330) target = $region56
        $region55: #{tpu_custom_call.1} parent=51 // pred_region
          %s333 = sand.u32 %s33, 1
          %s334 = scalar_lea.sflag [#allocation3], %s333
          %s335 = sand.u32 %s33, 1
          %s336 = smul.addr %s335, 16
          %s337 = scalar_lea.vmem [#allocation2], %s336
          %s339 = ssub.s32 256, 256
          %340 = vsyncadd %s334, %s339
          %s341 = smul.addr %s23, 2
          %s342 = smul.addr %s341, 128
          %s343 = scalar_lea.hbm %s0, %s342
          %s344 = sshll.u32 %s337, 4
          %s345 = int_to_ptr.vmem [resolvable:$true] %s344
          %350 = dma.hbm_to_vmem [thread:$0]  %s343, 256, %s345, %s334, 128, 128, 8
        $region56: #{tpu_custom_call.1} parent=51 // pred_fallthru
          _
      $region52: #{tpu_custom_call.1} parent=5 // pred_fallthru
        _
      %p351 = scmp.le.s32.totalorder 1, %s23
      %p352 = scmp.lt.s32.totalorder %s23, 3
      %p353 = pnand %p351, %p352
      %p354 = pneg %p353
      // Predicated region
      $region57: #{tpu_custom_call.1} parent=5 // pred_check
        _
      $region58: #{tpu_custom_call.1} parent=5 // pred_check_branch
        %356 = sbr.rel (%p353) target = $region60
      $region59: #{tpu_custom_call.1} parent=5 // pred_region
        %s357 = ssub.s32 %s23, 1
        %s358 = sand.u32 %s36, 1
        %s359 = scalar_lea.sflag [#allocation3], %s358
        %s360 = sand.u32 %s36, 1
        %s361 = smul.addr %s360, 16
        %s362 = scalar_lea.vmem [#allocation2], %s361
        // Predicated region
        $region61: #{tpu_custom_call.1} parent=59 // pred_check
          %p363 = pneg %p49
        $region62: #{tpu_custom_call.1} parent=59 // pred_check_branch
          %365 = sbr.rel (%p363) target = $region64
        $region63: #{tpu_custom_call.1} parent=59 // pred_region
          %366 = dma.done %s359, 256
        $region64: #{tpu_custom_call.1} parent=59 // pred_fallthru
          _
        // Predicated region
        $region65: #{tpu_custom_call.1} parent=59 // pred_check
          %p367 = pneg %p70
        $region66: #{tpu_custom_call.1} parent=59 // pred_check_branch
          %369 = sbr.rel (%p367) target = $region68
        $region67: #{tpu_custom_call.1} parent=59 // pred_region
          %370 = dma.done [#allocation6], 3072
        $region68: #{tpu_custom_call.1} parent=59 // pred_fallthru
          _
        // Predicated region
        $region69: #{tpu_custom_call.1} parent=59 // pred_check
          %p371 = pneg %p91
        $region70: #{tpu_custom_call.1} parent=59 // pred_check_branch
          %373 = sbr.rel (%p371) target = $region72
        $region71: #{tpu_custom_call.1} parent=59 // pred_region
          %374 = dma.done [#allocation6], 3072
        $region72: #{tpu_custom_call.1} parent=59 // pred_fallthru
          _
        %s375 = sand.u32 %s36, 1
        %s376 = scalar_lea.sflag [#allocation3], %s375
        %s377 = sand.u32 %s36, 1
        %s378 = smul.addr %s377, 16
        %s379 = scalar_lea.vmem [#allocation2], %s378
        %p380 = pneg %p49
        %p381 = pneg %p46
        %p382 = pneg %p70
        %p383 = pneg %p67
        %p384 = pneg %p91
        %p385 = pneg %p88
        %p386 = pneg %p112
        %p387 = pneg %p109
        %p388 = pneg %p133
        %p389 = pneg %p130
        %p390 = pneg %p154
        %p391 = pneg %p151
        %p392 = pneg %p175
        %p393 = pneg %p172
        %p394 = pneg %p196
        %p395 = pneg %p193
        %p396 = pneg %p217
        %p397 = pneg %p214
        %p398 = pneg %p238
        %p399 = pneg %p235
        %p400 = pneg %p264
        %p401 = pneg %p261
        %s402 = sand.u32 %s251, 1
        %s403 = scalar_lea.sflag [#allocation4], %s402
        %s404 = sand.u32 %s251, 1
        %s405 = smul.addr %s404, 16
        %s406 = scalar_lea.vmem [#allocation8], %s405
        %v408 = vld [vmem:[%s362] sm:$0xff]
        %v409 = vld [vmem:[%s362 + $0x8] sm:$0xff]
        %v410 = vld [vmem:[%s3] sm:$0x1]
        %v412 = vlaneseq
        %v413 = vshrl.u32 %v412, 7
        %v414 = vsub.s32 0, %v413
        %v415 = vrot.slane %v410, %v414
        %v417 = vmul.f32 %v408, %v415
        %v418 = vmul.f32 %v409, %v415
        %v419 = vld [vmem:[%s4] sm:$0x1]
        %v421 = vlaneseq
        %v422 = vshrl.u32 %v421, 7
        %v423 = vsub.s32 0, %v422
        %v424 = vrot.slane %v419, %v423
        %v426 = vadd.f32 %v417, %v424
        %v427 = vadd.f32 %v418, %v424
        %vm430 = vcmask 1040384
        %v431 = vrot.slane %v426, 7
        %v432 = vrot.slane %v427, 7
        %v433 = vsel %vm430, %v431, %v432
        %v436 = vsel %vm430, 0.0, %v431
        %vm437 = vcmask 1046528
        %v438 = vrot.slane %v426, 1
        %v439 = vrot.slane %v427, 1
        %v440 = vsel %vm437, %v438, %v439
        %v443 = vsel %vm437, %v439, 0.0
        %v444 = vpack.c.bf16 %v433, %v436
        %v445 = vpack.c.bf16 %v427, %v426
        %v446 = vpack.c.bf16 %v443, %v440
        %v447 = vld [vmem:[#allocation5] sm:$0xf]
        %v448 = vld [vmem:[#allocation5 + $0x4] sm:$0xf]
        %v449 = vld [vmem:[#allocation5 + $0x8] sm:$0xf]
        %v450 = vld [vmem:[#allocation5 + $0xc] sm:$0xf]
        %v451 = vld [vmem:[#allocation5 + $0x10] sm:$0xf]
        %v452 = vld [vmem:[#allocation5 + $0x14] sm:$0xf]
        %v453 = vld [vmem:[#allocation5 + $0x18] sm:$0xf]
        %v454 = vld [vmem:[#allocation5 + $0x1c] sm:$0xf]
        %v455 = vld [vmem:[#allocation5 + $0x20] sm:$0xf]
        %v456 = vld [vmem:[#allocation5 + $0x24] sm:$0xf]
        %v457 = vld [vmem:[#allocation5 + $0x28] sm:$0xf]
        %v458 = vld [vmem:[#allocation5 + $0x2c] sm:$0xf]
        %v459 = vld [vmem:[#allocation5 + $0x30] sm:$0xf]
        %v460 = vld [vmem:[#allocation5 + $0x34] sm:$0xf]
        %v461 = vld [vmem:[#allocation5 + $0x38] sm:$0xf]
        %v462 = vld [vmem:[#allocation5 + $0x3c] sm:$0xf]
        %v463 = vld [vmem:[#allocation5 + $0x40] sm:$0xf]
        %v464 = vld [vmem:[#allocation5 + $0x44] sm:$0xf]
        %v465 = vld [vmem:[#allocation5 + $0x48] sm:$0xf]
        %v466 = vld [vmem:[#allocation5 + $0x4c] sm:$0xf]
        %v467 = vld [vmem:[#allocation5 + $0x50] sm:$0xf]
        %v468 = vld [vmem:[#allocation5 + $0x54] sm:$0xf]
        %v469 = vld [vmem:[#allocation5 + $0x58] sm:$0xf]
        %v470 = vld [vmem:[#allocation5 + $0x5c] sm:$0xf]
        %v471 = vld [vmem:[#allocation5 + $0x60] sm:$0xf]
        %v472 = vld [vmem:[#allocation5 + $0x64] sm:$0xf]
        %v473 = vld [vmem:[#allocation5 + $0x68] sm:$0xf]
        %v474 = vld [vmem:[#allocation5 + $0x6c] sm:$0xf]
        %v475 = vld [vmem:[#allocation5 + $0x70] sm:$0xf]
        %v476 = vld [vmem:[#allocation5 + $0x74] sm:$0xf]
        %v477 = vld [vmem:[#allocation5 + $0x78] sm:$0xf]
        %v478 = vld [vmem:[#allocation5 + $0x7c] sm:$0xf]
        %v479 = vld [vmem:[#allocation5 + $0x80] sm:$0xf]
        %v480 = vld [vmem:[#allocation5 + $0x84] sm:$0xf]
        %v481 = vld [vmem:[#allocation5 + $0x88] sm:$0xf]
        %v482 = vld [vmem:[#allocation5 + $0x8c] sm:$0xf]
        %v483 = vld [vmem:[#allocation5 + $0x90] sm:$0xf]
        %v484 = vld [vmem:[#allocation5 + $0x94] sm:$0xf]
        %v485 = vld [vmem:[#allocation5 + $0x98] sm:$0xf]
        %v486 = vld [vmem:[#allocation5 + $0x9c] sm:$0xf]
        %v487 = vld [vmem:[#allocation5 + $0xa0] sm:$0xf]
        %v488 = vld [vmem:[#allocation5 + $0xa4] sm:$0xf]
        %v489 = vld [vmem:[#allocation5 + $0xa8] sm:$0xf]
        %v490 = vld [vmem:[#allocation5 + $0xac] sm:$0xf]
        %v491 = vld [vmem:[#allocation5 + $0xb0] sm:$0xf]
        %v492 = vld [vmem:[#allocation5 + $0xb4] sm:$0xf]
        %v493 = vld [vmem:[#allocation5 + $0xb8] sm:$0xf]
        %v494 = vld [vmem:[#allocation5 + $0xbc] sm:$0xf]
        %v543 = vunpack.c.l.b16 %v447
        %v544 = vunpack.c.l.b16 %v448
        %v545 = vunpack.c.l.b16 %v449
        %v546 = vunpack.c.l.b16 %v450
        %v547 = vunpack.c.l.b16 %v451
        %v548 = vunpack.c.l.b16 %v452
        %v549 = vunpack.c.l.b16 %v453
        %v550 = vunpack.c.l.b16 %v454
        %v551 = vunpack.c.l.b16 %v455
        %v552 = vunpack.c.l.b16 %v456
        %v553 = vunpack.c.l.b16 %v457
        %v554 = vunpack.c.l.b16 %v458
        %v555 = vunpack.c.l.b16 %v459
        %v556 = vunpack.c.l.b16 %v460
        %v557 = vunpack.c.l.b16 %v461
        %v558 = vunpack.c.l.b16 %v462
        %v559 = vunpack.c.l.b16 %v463
        %v560 = vunpack.c.l.b16 %v464
        %v561 = vunpack.c.l.b16 %v465
        %v562 = vunpack.c.l.b16 %v466
        %v563 = vunpack.c.l.b16 %v467
        %v564 = vunpack.c.l.b16 %v468
        %v565 = vunpack.c.l.b16 %v469
        %v566 = vunpack.c.l.b16 %v470
        %v567 = vunpack.c.l.b16 %v471
        %v568 = vunpack.c.l.b16 %v472
        %v569 = vunpack.c.l.b16 %v473
        %v570 = vunpack.c.l.b16 %v474
        %v571 = vunpack.c.l.b16 %v475
        %v572 = vunpack.c.l.b16 %v476
        %v573 = vunpack.c.l.b16 %v477
        %v574 = vunpack.c.l.b16 %v478
        %v575 = vunpack.c.l.b16 %v479
        %v576 = vunpack.c.l.b16 %v480
        %v577 = vunpack.c.l.b16 %v481
        %v578 = vunpack.c.l.b16 %v482
        %v579 = vunpack.c.l.b16 %v483
        %v580 = vunpack.c.l.b16 %v484
        %v581 = vunpack.c.l.b16 %v485
        %v582 = vunpack.c.l.b16 %v486
        %v583 = vunpack.c.l.b16 %v487
        %v584 = vunpack.c.l.b16 %v488
        %v585 = vunpack.c.l.b16 %v489
        %v586 = vunpack.c.l.b16 %v490
        %v587 = vunpack.c.l.b16 %v491
        %v588 = vunpack.c.l.b16 %v492
        %v589 = vunpack.c.l.b16 %v493
        %v590 = vunpack.c.l.b16 %v494
        %v591 = vpack.c.b16 %v544, %v543
        %v592 = vpack.c.b16 %v546, %v545
        %v593 = vpack.c.b16 %v548, %v547
        %v594 = vpack.c.b16 %v550, %v549
        %v595 = vpack.c.b16 %v552, %v551
        %v596 = vpack.c.b16 %v554, %v553
        %v597 = vpack.c.b16 %v556, %v555
        %v598 = vpack.c.b16 %v558, %v557
        %v599 = vpack.c.b16 %v560, %v559
        %v600 = vpack.c.b16 %v562, %v561
        %v601 = vpack.c.b16 %v564, %v563
        %v602 = vpack.c.b16 %v566, %v565
        %v603 = vpack.c.b16 %v568, %v567
        %v604 = vpack.c.b16 %v570, %v569
        %v605 = vpack.c.b16 %v572, %v571
        %v606 = vpack.c.b16 %v574, %v573
        %v607 = vpack.c.b16 %v576, %v575
        %v608 = vpack.c.b16 %v578, %v577
        %v609 = vpack.c.b16 %v580, %v579
        %v610 = vpack.c.b16 %v582, %v581
        %v611 = vpack.c.b16 %v584, %v583
        %v612 = vpack.c.b16 %v586, %v585
        %v613 = vpack.c.b16 %v588, %v587
        %v614 = vpack.c.b16 %v590, %v589
        %639 = vmatprep.subr.bf16.mxu0 0
        %640 = vmatpush1.bf16.msra.mxu0 %v591
        %641 = vmatprep.subr.bf16.mxu0 0
        %642 = vmatpush1.bf16.msra.mxu0 %v592
        %643 = vmatprep.subr.bf16.mxu0 0
        %644 = vmatpush1.bf16.msra.mxu0 %v593
        %645 = vmatprep.subr.bf16.mxu0 0
        %646 = vmatpush1.bf16.msra.mxu0 %v594
        %647 = vmatprep.subr.bf16.mxu0 0
        %648 = vmatpush1.bf16.msra.mxu0 %v595
        %649 = vmatprep.subr.bf16.mxu0 0
        %650 = vmatpush1.bf16.msra.mxu0 %v596
        %651 = vmatprep.subr.bf16.mxu0 0
        %652 = vmatpush1.bf16.msra.mxu0 %v597
        %653 = vmatprep.subr.bf16.mxu0 0
        %654 = vmatpush1.bf16.msra.mxu0 %v598
        %655 = vmatprep.subr.bf16.mxu0 0
        %656 = vmatpush1.bf16.msra.mxu0 %v599
        %657 = vmatprep.subr.bf16.mxu0 0
        %658 = vmatpush1.bf16.msra.mxu0 %v600
        %659 = vmatprep.subr.bf16.mxu0 0
        %660 = vmatpush1.bf16.msra.mxu0 %v601
        %661 = vmatprep.subr.bf16.mxu0 0
        %662 = vmatpush1.bf16.msra.mxu0 %v602
        %663 = vmatprep.subr.bf16.mxu0 0
        %664 = vmatpush1.bf16.msra.mxu0 %v603
        %665 = vmatprep.subr.bf16.mxu0 0
        %666 = vmatpush1.bf16.msra.mxu0 %v604
        %667 = vmatprep.subr.bf16.mxu0 0
        %668 = vmatpush1.bf16.msra.mxu0 %v605
        %669 = vmatprep.subr.bf16.mxu0 0
        %670 = vmatpush1.bf16.msra.mxu0 %v606
        %671 = vmatprep.mubr.bf16.mxu0 %v445
        %672 = vmatmul.mubr.bf16.gmra.mrb[0].mxu0 %v444
        %v673 = vpop.f32.mrb[0].mxu0
        %v674 = vadd.f32 0.0, %v673
        %v675 = vpop.f32.mrb[0].mxu0
        %v676 = vpop.f32.mrb[0].mxu0
        %v677 = vadd.f32 0.0, %v676
        %v678 = vpop.f32.mrb[0].mxu0
        %679 = vdwg.mxu0
        %680 = vmatprep.subr.bf16.mxu0 0
        %681 = vmatpush1.bf16.msra.mxu0 %v607
        %682 = vmatprep.subr.bf16.mxu0 0
        %683 = vmatpush1.bf16.msra.mxu0 %v608
        %684 = vmatprep.subr.bf16.mxu0 0
        %685 = vmatpush1.bf16.msra.mxu0 %v609
        %686 = vmatprep.subr.bf16.mxu0 0
        %687 = vmatpush1.bf16.msra.mxu0 %v610
        %688 = vmatprep.subr.bf16.mxu0 0
        %689 = vmatpush1.bf16.msra.mxu0 %v611
        %690 = vmatprep.subr.bf16.mxu0 0
        %691 = vmatpush1.bf16.msra.mxu0 %v612
        %692 = vmatprep.subr.bf16.mxu0 0
        %693 = vmatpush1.bf16.msra.mxu0 %v613
        %694 = vmatprep.subr.bf16.mxu0 0
        %695 = vmatpush1.bf16.msra.mxu0 %v614
        %696 = vmatprep.subr.bf16.mxu0 0
        %697 = vmatpush1.bf16.msra.mxu0 0
        %698 = vmatprep.subr.bf16.mxu0 0
        %699 = vmatpush1.bf16.msra.mxu0 0
        %700 = vmatprep.subr.bf16.mxu0 0
        %701 = vmatpush1.bf16.msra.mxu0 0
        %702 = vmatprep.subr.bf16.mxu0 0
        %703 = vmatpush1.bf16.msra.mxu0 0
        %704 = vmatprep.subr.bf16.mxu0 0
        %705 = vmatpush1.bf16.msra.mxu0 0
        %706 = vmatprep.subr.bf16.mxu0 0
        %707 = vmatpush1.bf16.msra.mxu0 0
        %708 = vmatprep.subr.bf16.mxu0 0
        %709 = vmatpush1.bf16.msra.mxu0 0
        %710 = vmatprep.subr.bf16.mxu0 0
        %711 = vmatpush1.bf16.msra.mxu0 0
        %712 = vmatprep.mubr.bf16.mxu0 0
        %713 = vmatmul.mubr.bf16.gmra.mrb[0].mxu0 %v446
        %v714 = vpop.f32.mrb[0].mxu0
        %v715 = vadd.f32 %v674, %v714
        %v716 = vpop.f32.mrb[0].mxu0
        %v717 = vpop.f32.mrb[0].mxu0
        %v718 = vadd.f32 %v677, %v717
        %v719 = vpop.f32.mrb[0].mxu0
        %720 = vdwg.mxu0
        %v721 = vld [vmem:[%s5] sm:$0x1]
        %v723 = vlaneseq
        %v724 = vshrl.u32 %v723, 7
        %v725 = vsub.s32 0, %v724
        %v726 = vrot.slane %v721, %v725
        %v728 = vmul.f32 %v715, %v726
        %v729 = vmul.f32 %v718, %v726
        %v730 = vld [vmem:[%s6] sm:$0x1]
        %v732 = vlaneseq
        %v733 = vshrl.u32 %v732, 7
        %v734 = vsub.s32 0, %v733
        %v735 = vrot.slane %v730, %v734
        %v737 = vadd.f32 %v728, %v735
        %v738 = vadd.f32 %v729, %v735
        %vm739 = vcmp.gt.f32.partialorder %v737, 0.0
        %vm740 = vcmp.gt.f32.partialorder %v738, 0.0
        %v741 = vld [vmem:[%s9] sm:$0x1]
        %v743 = vlaneseq
        %v744 = vshrl.u32 %v743, 7
        %v745 = vsub.s32 0, %v744
        %v746 = vrot.slane %v741, %v745
        %v748 = vmul.f32 %v746, %v737
        %v749 = vmul.f32 %v746, %v738
        %v750 = vsel %vm739, %v737, %v748
        %v751 = vsel %vm740, %v738, %v749
        %v754 = vrot.slane %v750, 7
        %v755 = vrot.slane %v751, 7
        %v756 = vsel %vm430, %v754, %v755
        %v759 = vsel %vm430, 0.0, %v754
        %v760 = vrot.slane %v750, 1
        %v761 = vrot.slane %v751, 1
        %v762 = vsel %vm437, %v760, %v761
        %v765 = vsel %vm437, %v761, 0.0
        %v766 = vpack.c.bf16 %v756, %v759
        %v767 = vpack.c.bf16 %v751, %v750
        %v768 = vpack.c.bf16 %v765, %v762
        %v769 = vld [vmem:[#allocation7] sm:$0xf]
        %v770 = vld [vmem:[#allocation7 + $0x4] sm:$0xf]
        %v771 = vld [vmem:[#allocation7 + $0x8] sm:$0xf]
        %v772 = vld [vmem:[#allocation7 + $0xc] sm:$0xf]
        %v773 = vld [vmem:[#allocation7 + $0x10] sm:$0xf]
        %v774 = vld [vmem:[#allocation7 + $0x14] sm:$0xf]
        %v775 = vld [vmem:[#allocation7 + $0x18] sm:$0xf]
        %v776 = vld [vmem:[#allocation7 + $0x1c] sm:$0xf]
        %v777 = vld [vmem:[#allocation7 + $0x20] sm:$0xf]
        %v778 = vld [vmem:[#allocation7 + $0x24] sm:$0xf]
        %v779 = vld [vmem:[#allocation7 + $0x28] sm:$0xf]
        %v780 = vld [vmem:[#allocation7 + $0x2c] sm:$0xf]
        %v781 = vld [vmem:[#allocation7 + $0x30] sm:$0xf]
        %v782 = vld [vmem:[#allocation7 + $0x34] sm:$0xf]
        %v783 = vld [vmem:[#allocation7 + $0x38] sm:$0xf]
        %v784 = vld [vmem:[#allocation7 + $0x3c] sm:$0xf]
        %v785 = vld [vmem:[#allocation7 + $0x40] sm:$0xf]
        %v786 = vld [vmem:[#allocation7 + $0x44] sm:$0xf]
        %v787 = vld [vmem:[#allocation7 + $0x48] sm:$0xf]
        %v788 = vld [vmem:[#allocation7 + $0x4c] sm:$0xf]
        %v789 = vld [vmem:[#allocation7 + $0x50] sm:$0xf]
        %v790 = vld [vmem:[#allocation7 + $0x54] sm:$0xf]
        %v791 = vld [vmem:[#allocation7 + $0x58] sm:$0xf]
        %v792 = vld [vmem:[#allocation7 + $0x5c] sm:$0xf]
        %v793 = vld [vmem:[#allocation7 + $0x60] sm:$0xf]
        %v794 = vld [vmem:[#allocation7 + $0x64] sm:$0xf]
        %v795 = vld [vmem:[#allocation7 + $0x68] sm:$0xf]
        %v796 = vld [vmem:[#allocation7 + $0x6c] sm:$0xf]
        %v797 = vld [vmem:[#allocation7 + $0x70] sm:$0xf]
        %v798 = vld [vmem:[#allocation7 + $0x74] sm:$0xf]
        %v799 = vld [vmem:[#allocation7 + $0x78] sm:$0xf]
        %v800 = vld [vmem:[#allocation7 + $0x7c] sm:$0xf]
        %v801 = vld [vmem:[#allocation7 + $0x80] sm:$0xf]
        %v802 = vld [vmem:[#allocation7 + $0x84] sm:$0xf]
        %v803 = vld [vmem:[#allocation7 + $0x88] sm:$0xf]
        %v804 = vld [vmem:[#allocation7 + $0x8c] sm:$0xf]
        %v805 = vld [vmem:[#allocation7 + $0x90] sm:$0xf]
        %v806 = vld [vmem:[#allocation7 + $0x94] sm:$0xf]
        %v807 = vld [vmem:[#allocation7 + $0x98] sm:$0xf]
        %v808 = vld [vmem:[#allocation7 + $0x9c] sm:$0xf]
        %v809 = vld [vmem:[#allocation7 + $0xa0] sm:$0xf]
        %v810 = vld [vmem:[#allocation7 + $0xa4] sm:$0xf]
        %v811 = vld [vmem:[#allocation7 + $0xa8] sm:$0xf]
        %v812 = vld [vmem:[#allocation7 + $0xac] sm:$0xf]
        %v813 = vld [vmem:[#allocation7 + $0xb0] sm:$0xf]
        %v814 = vld [vmem:[#allocation7 + $0xb4] sm:$0xf]
        %v815 = vld [vmem:[#allocation7 + $0xb8] sm:$0xf]
        %v816 = vld [vmem:[#allocation7 + $0xbc] sm:$0xf]
        %v865 = vunpack.c.l.b16 %v769
        %v866 = vunpack.c.l.b16 %v770
        %v867 = vunpack.c.l.b16 %v771
        %v868 = vunpack.c.l.b16 %v772
        %v869 = vunpack.c.l.b16 %v773
        %v870 = vunpack.c.l.b16 %v774
        %v871 = vunpack.c.l.b16 %v775
        %v872 = vunpack.c.l.b16 %v776
        %v873 = vunpack.c.l.b16 %v777
        %v874 = vunpack.c.l.b16 %v778
        %v875 = vunpack.c.l.b16 %v779
        %v876 = vunpack.c.l.b16 %v780
        %v877 = vunpack.c.l.b16 %v781
        %v878 = vunpack.c.l.b16 %v782
        %v879 = vunpack.c.l.b16 %v783
        %v880 = vunpack.c.l.b16 %v784
        %v881 = vunpack.c.l.b16 %v785
        %v882 = vunpack.c.l.b16 %v786
        %v883 = vunpack.c.l.b16 %v787
        %v884 = vunpack.c.l.b16 %v788
        %v885 = vunpack.c.l.b16 %v789
        %v886 = vunpack.c.l.b16 %v790
        %v887 = vunpack.c.l.b16 %v791
        %v888 = vunpack.c.l.b16 %v792
        %v889 = vunpack.c.l.b16 %v793
        %v890 = vunpack.c.l.b16 %v794
        %v891 = vunpack.c.l.b16 %v795
        %v892 = vunpack.c.l.b16 %v796
        %v893 = vunpack.c.l.b16 %v797
        %v894 = vunpack.c.l.b16 %v798
        %v895 = vunpack.c.l.b16 %v799
        %v896 = vunpack.c.l.b16 %v800
        %v897 = vunpack.c.l.b16 %v801
        %v898 = vunpack.c.l.b16 %v802
        %v899 = vunpack.c.l.b16 %v803
        %v900 = vunpack.c.l.b16 %v804
        %v901 = vunpack.c.l.b16 %v805
        %v902 = vunpack.c.l.b16 %v806
        %v903 = vunpack.c.l.b16 %v807
        %v904 = vunpack.c.l.b16 %v808
        %v905 = vunpack.c.l.b16 %v809
        %v906 = vunpack.c.l.b16 %v810
        %v907 = vunpack.c.l.b16 %v811
        %v908 = vunpack.c.l.b16 %v812
        %v909 = vunpack.c.l.b16 %v813
        %v910 = vunpack.c.l.b16 %v814
        %v911 = vunpack.c.l.b16 %v815
        %v912 = vunpack.c.l.b16 %v816
        %v913 = vpack.c.b16 %v866, %v865
        %v914 = vpack.c.b16 %v868, %v867
        %v915 = vpack.c.b16 %v870, %v869
        %v916 = vpack.c.b16 %v872, %v871
        %v917 = vpack.c.b16 %v874, %v873
        %v918 = vpack.c.b16 %v876, %v875
        %v919 = vpack.c.b16 %v878, %v877
        %v920 = vpack.c.b16 %v880, %v879
        %v921 = vpack.c.b16 %v882, %v881
        %v922 = vpack.c.b16 %v884, %v883
        %v923 = vpack.c.b16 %v886, %v885
        %v924 = vpack.c.b16 %v888, %v887
        %v925 = vpack.c.b16 %v890, %v889
        %v926 = vpack.c.b16 %v892, %v891
        %v927 = vpack.c.b16 %v894, %v893
        %v928 = vpack.c.b16 %v896, %v895
        %v929 = vpack.c.b16 %v898, %v897
        %v930 = vpack.c.b16 %v900, %v899
        %v931 = vpack.c.b16 %v902, %v901
        %v932 = vpack.c.b16 %v904, %v903
        %v933 = vpack.c.b16 %v906, %v905
        %v934 = vpack.c.b16 %v908, %v907
        %v935 = vpack.c.b16 %v910, %v909
        %v936 = vpack.c.b16 %v912, %v911
        %961 = vmatprep.subr.bf16.mxu0 0
        %962 = vmatpush1.bf16.msra.mxu0 %v913
        %963 = vmatprep.subr.bf16.mxu0 0
        %964 = vmatpush1.bf16.msra.mxu0 %v914
        %965 = vmatprep.subr.bf16.mxu0 0
        %966 = vmatpush1.bf16.msra.mxu0 %v915
        %967 = vmatprep.subr.bf16.mxu0 0
        %968 = vmatpush1.bf16.msra.mxu0 %v916
        %969 = vmatprep.subr.bf16.mxu0 0
        %970 = vmatpush1.bf16.msra.mxu0 %v917
        %971 = vmatprep.subr.bf16.mxu0 0
        %972 = vmatpush1.bf16.msra.mxu0 %v918
        %973 = vmatprep.subr.bf16.mxu0 0
        %974 = vmatpush1.bf16.msra.mxu0 %v919
        %975 = vmatprep.subr.bf16.mxu0 0
        %976 = vmatpush1.bf16.msra.mxu0 %v920
        %977 = vmatprep.subr.bf16.mxu0 0
        %978 = vmatpush1.bf16.msra.mxu0 %v921
        %979 = vmatprep.subr.bf16.mxu0 0
        %980 = vmatpush1.bf16.msra.mxu0 %v922
        %981 = vmatprep.subr.bf16.mxu0 0
        %982 = vmatpush1.bf16.msra.mxu0 %v923
        %983 = vmatprep.subr.bf16.mxu0 0
        %984 = vmatpush1.bf16.msra.mxu0 %v924
        %985 = vmatprep.subr.bf16.mxu0 0
        %986 = vmatpush1.bf16.msra.mxu0 %v925
        %987 = vmatprep.subr.bf16.mxu0 0
        %988 = vmatpush1.bf16.msra.mxu0 %v926
        %989 = vmatprep.subr.bf16.mxu0 0
        %990 = vmatpush1.bf16.msra.mxu0 %v927
        %991 = vmatprep.subr.bf16.mxu0 0
        %992 = vmatpush1.bf16.msra.mxu0 %v928
        %993 = vmatprep.mubr.bf16.mxu0 %v767
        %994 = vmatmul.mubr.bf16.gmra.mrb[0].mxu0 %v766
        %v995 = vpop.f32.mrb[0].mxu0
        %v996 = vadd.f32 0.0, %v995
        %v997 = vpop.f32.mrb[0].mxu0
        %v998 = vpop.f32.mrb[0].mxu0
        %v999 = vadd.f32 0.0, %v998
        %v1000 = vpop.f32.mrb[0].mxu0
        %1001 = vdwg.mxu0
        %1002 = vmatprep.subr.bf16.mxu0 0
        %1003 = vmatpush1.bf16.msra.mxu0 %v929
        %1004 = vmatprep.subr.bf16.mxu0 0
        %1005 = vmatpush1.bf16.msra.mxu0 %v930
        %1006 = vmatprep.subr.bf16.mxu0 0
        %1007 = vmatpush1.bf16.msra.mxu0 %v931
        %1008 = vmatprep.subr.bf16.mxu0 0
        %1009 = vmatpush1.bf16.msra.mxu0 %v932
        %1010 = vmatprep.subr.bf16.mxu0 0
        %1011 = vmatpush1.bf16.msra.mxu0 %v933
        %1012 = vmatprep.subr.bf16.mxu0 0
        %1013 = vmatpush1.bf16.msra.mxu0 %v934
        %1014 = vmatprep.subr.bf16.mxu0 0
        %1015 = vmatpush1.bf16.msra.mxu0 %v935
        %1016 = vmatprep.subr.bf16.mxu0 0
        %1017 = vmatpush1.bf16.msra.mxu0 %v936
        %1018 = vmatprep.subr.bf16.mxu0 0
        %1019 = vmatpush1.bf16.msra.mxu0 0
        %1020 = vmatprep.subr.bf16.mxu0 0
        %1021 = vmatpush1.bf16.msra.mxu0 0
        %1022 = vmatprep.subr.bf16.mxu0 0
        %1023 = vmatpush1.bf16.msra.mxu0 0
        %1024 = vmatprep.subr.bf16.mxu0 0
        %1025 = vmatpush1.bf16.msra.mxu0 0
        %1026 = vmatprep.subr.bf16.mxu0 0
        %1027 = vmatpush1.bf16.msra.mxu0 0
        %1028 = vmatprep.subr.bf16.mxu0 0
        %1029 = vmatpush1.bf16.msra.mxu0 0
        %1030 = vmatprep.subr.bf16.mxu0 0
        %1031 = vmatpush1.bf16.msra.mxu0 0
        %1032 = vmatprep.subr.bf16.mxu0 0
        %1033 = vmatpush1.bf16.msra.mxu0 0
        %1034 = vmatprep.mubr.bf16.mxu0 0
        %1035 = vmatmul.mubr.bf16.gmra.mrb[0].mxu0 %v768
        %v1036 = vpop.f32.mrb[0].mxu0
        %v1037 = vadd.f32 %v996, %v1036
        %v1038 = vpop.f32.mrb[0].mxu0
        %v1039 = vpop.f32.mrb[0].mxu0
        %v1040 = vadd.f32 %v999, %v1039
        %v1041 = vpop.f32.mrb[0].mxu0
        %1042 = vdwg.mxu0
        %v1043 = vld [vmem:[%s7] sm:$0x1]
        %v1045 = vlaneseq
        %v1046 = vshrl.u32 %v1045, 7
        %v1047 = vsub.s32 0, %v1046
        %v1048 = vrot.slane %v1043, %v1047
        %v1050 = vmul.f32 %v1037, %v1048
        %v1051 = vmul.f32 %v1040, %v1048
        %v1052 = vld [vmem:[%s8] sm:$0x1]
        %v1054 = vlaneseq
        %v1055 = vshrl.u32 %v1054, 7
        %v1056 = vsub.s32 0, %v1055
        %v1057 = vrot.slane %v1052, %v1056
        %v1059 = vadd.f32 %v1050, %v1057
        %v1060 = vadd.f32 %v1051, %v1057
        %v1061 = vadd.f32 %v1059, %v408
        %v1062 = vadd.f32 %v1060, %v409
        %1063 = vst [vmem:[%s406] sm:$0xff] %v1061
        %1064 = vst [vmem:[%s406 + $0x8] sm:$0xff] %v1062
        %s1065 = sand.u32 %s251, 1
        %s1066 = scalar_lea.sflag [#allocation4], %s1065
        %s1067 = sand.u32 %s251, 1
        %s1068 = smul.addr %s1067, 16
        %s1069 = scalar_lea.vmem [#allocation8], %s1068
        // Predicated region
        $region73: #{tpu_custom_call.1} parent=59 // pred_check
          %p1070 = pneg %p261
        $region74: #{tpu_custom_call.1} parent=59 // pred_check_branch
          %1072 = sbr.rel (%p1070) target = $region76
        $region75: #{tpu_custom_call.1} parent=59 // pred_region
          %s1074 = ssub.s32 256, 256
          %1075 = vsyncadd %s1066, %s1074
          %s1076 = smul.addr %s28, 2
          %s1077 = smul.addr %s1076, 128
          %s1078 = scalar_lea.hbm %s10, %s1077
          %s1079 = sshll.u32 %s1069, 4
          %s1080 = int_to_ptr.vmem [resolvable:$true] %s1079
          %1085 = dma.vmem_to_hbm [thread:$0]  %s1080, 256, %s1078, %s1066, 128, 128, 8
        $region76: #{tpu_custom_call.1} parent=59 // pred_fallthru
          _
      $region60: #{tpu_custom_call.1} parent=5 // pred_fallthru
        _
      %p1086 = scmp.le.s32.totalorder 2, %s23
      // Predicated region
      $region77: #{tpu_custom_call.1} parent=5 // pred_check
        %p1087 = pneg %p1086
      $region78: #{tpu_custom_call.1} parent=5 // pred_check_branch
        %1089 = sbr.rel (%p1087) target = $region80
      $region79: #{tpu_custom_call.1} parent=5 // pred_region
        %s1090 = ssub.s32 %s23, 2
        // Predicated region
        $region81: #{tpu_custom_call.1} parent=79 // pred_check
          %p1091 = pneg %p267
        $region82: #{tpu_custom_call.1} parent=79 // pred_check_branch
          %1093 = sbr.rel (%p1091) target = $region84
        $region83: #{tpu_custom_call.1} parent=79 // pred_region
          %s1094 = sand.u32 %s252, 1
          %s1095 = scalar_lea.sflag [#allocation4], %s1094
          %s1096 = sand.u32 %s252, 1
          %s1097 = smul.addr %s1096, 16
          %s1098 = scalar_lea.vmem [#allocation8], %s1097
          %1099 = dma.done %s1095, 256
        $region84: #{tpu_custom_call.1} parent=79 // pred_fallthru
          _
      $region80: #{tpu_custom_call.1} parent=5 // pred_fallthru
        _
    $region6: #{tpu_custom_call.1} parent=1 // loop_footer
      %s27 = sadd.s32 1, %s23
    $region7: #{tpu_custom_call.1} parent=1 // loop_footer_branch
      %22 = sbr.rel target = $region3
    $region8: #{tpu_custom_call.1} parent=1 // loop_exit
      _
    %1100 = vsyncpa [#allocation3], 1
    %s1101 = scalar_lea.sflag [#allocation3], 1
    %1102 = vsyncpa %s1101, 1
    %1103 = vsyncpa [#allocation6], 1
    %1104 = vsyncpa [#allocation4], 1
    %s1105 = scalar_lea.sflag [#allocation4], 1
    %1106 = vsyncpa %s1105, 1

</llo_original>
